<compile_context>
chip_gen: v7x
topology: tpu7x:2x2x1
jax: 0.10.0
libtpu: 0.0.40
codegen_flags: <defaults>
</compile_context>

<pallas_src>
import jax
import jax.numpy as jnp
from jax.experimental import pallas as pl
from jax.experimental.pallas import tpu as pltpu


def two_fc_kernel(x_ref, wr_ref, wt_ref, o_ref):
    # Cast the activation tile in-VMEM (no extra HBM round trip) so the
    # dominant K=input_dim matmul runs on the bf16 MXU path; accumulate in f32.
    x = x_ref[...].astype(wr_ref.dtype)
    h = jnp.dot(x, wr_ref[...], preferred_element_type=jnp.float32)
    # Tiny folded tail (reduced_dim x num_classes), kept f32 for accuracy.
    o_ref[...] = jnp.dot(h, wt_ref[...],
                         preferred_element_type=jnp.float32).astype(o_ref.dtype)


def prepare_two_fc_params(w_reduced, w_fc1, w_fc2, w_class,
                          *, weight_dtype=jnp.bfloat16):
    """One-time preprocessing of PyTorch-convention (out, in) weights.

    Call this once (outside any hot path). Returns:
      wr_t   : (input_dim, reduced_dim)   weight_dtype (default bf16)
      w_tail : (reduced_dim, num_classes) float32, = (Wc @ W2 @ W1).T folded in f32
    """
    wr = jnp.asarray(w_reduced, jnp.float32)
    w1 = jnp.asarray(w_fc1, jnp.float32)
    w2 = jnp.asarray(w_fc2, jnp.float32)
    wc = jnp.asarray(w_class, jnp.float32)
    wr_t = wr.T.astype(weight_dtype)          # (input_dim, reduced_dim)
    w_tail = (wc @ w2 @ w1).T                 # (reduced_dim, num_classes), f32
    return wr_t, w_tail


def _default_batch_tile(batch):
    if batch <= 512:
        return batch
    for t in range(512, 7, -8):               # largest multiple of 8 dividing B
        if batch % t == 0:
            return t
    return batch                              # fall back to full batch


def _ceil_to(n, m):
    return ((n + m - 1) // m) * m


def two_fc_layer(x, wr_t, w_tail, *, batch_tile=None):
    """x: (B, input_dim). wr_t / w_tail come from prepare_two_fc_params."""
    B, input_dim = x.shape
    input_dim_w, reduced_dim = wr_t.shape
    reduced_dim_t, num_classes = w_tail.shape
    assert input_dim == input_dim_w and reduced_dim == reduced_dim_t

    if batch_tile is None:
        batch_tile = _default_batch_tile(B)
    assert B % batch_tile == 0
    assert batch_tile == B or batch_tile % 8 == 0, (
        "batch_tile must be a multiple of 8 (f32 sublane) when tiling the batch")

    grid = (B // batch_tile,)

    # Conservative VMEM bound: double-buffered x/out tiles + weights + headroom.
    x_tile_b = batch_tile * _ceil_to(input_dim, 128) * x.dtype.itemsize
    wr_b = _ceil_to(input_dim, 16) * _ceil_to(reduced_dim, 128) * wr_t.dtype.itemsize
    wt_b = _ceil_to(reduced_dim, 8) * _ceil_to(num_classes, 128) * w_tail.dtype.itemsize
    out_b = batch_tile * _ceil_to(num_classes, 128) * x.dtype.itemsize
    h_b = batch_tile * _ceil_to(reduced_dim, 128) * 4
    vmem_limit = 2 * (x_tile_b + wr_b + wt_b + out_b) + h_b + (8 << 20)

    flops = 2 * B * input_dim * reduced_dim + 2 * B * reduced_dim * num_classes
    bytes_accessed = (x.size * x.dtype.itemsize
                      + wr_t.size * wr_t.dtype.itemsize
                      + w_tail.size * w_tail.dtype.itemsize
                      + B * num_classes * x.dtype.itemsize)

    return pl.pallas_call(
        two_fc_kernel,
        out_shape=jax.ShapeDtypeStruct((B, num_classes), x.dtype),
        grid_spec=pltpu.PrefetchScalarGridSpec(
            num_scalar_prefetch=0,
            grid=grid,
            in_specs=[
                pl.BlockSpec((batch_tile, input_dim), lambda i: (i, 0)),
                pl.BlockSpec((input_dim, reduced_dim), lambda i: (0, 0)),
                pl.BlockSpec((reduced_dim, num_classes), lambda i: (0, 0)),
            ],
            out_specs=pl.BlockSpec((batch_tile, num_classes), lambda i: (i, 0)),
        ),
        compiler_params=pltpu.CompilerParams(
            dimension_semantics=("parallel",),   # >=2 steps shards across v7x TCs
            vmem_limit_bytes=int(vmem_limit)),
        cost_estimate=pl.CostEstimate(
            flops=flops, transcendentals=0, bytes_accessed=bytes_accessed),
    )(x, wr_t, w_tail)


if __name__ == "__main__":
    # Module defaults: input_dim=1582, reduced_dim=128, fc_dim=64, num_classes=7
    input_dim, reduced_dim, fc_dim, num_classes = 1582, 128, 64, 7
    B = 8

    key = jax.random.PRNGKey(0)
    kx, kr, k1, k2, kc = jax.random.split(key, 5)

    x = jax.random.normal(kx, (B, input_dim), dtype=jnp.float32)
    # Deterministic synthetic weights in PyTorch (out_features, in_features) convention.
    w_reduced = jax.random.normal(kr, (reduced_dim, input_dim), jnp.float32) * 0.02
    w_fc1 = jax.random.normal(k1, (fc_dim, reduced_dim), jnp.float32) * 0.05
    w_fc2 = jax.random.normal(k2, (fc_dim, fc_dim), jnp.float32) * 0.05
    w_class = jax.random.normal(kc, (num_classes, fc_dim), jnp.float32) * 0.05

    # One-time weight preprocessing (pre-transpose + bf16 cast + tail fold).
    wr_t, w_tail = prepare_two_fc_params(w_reduced, w_fc1, w_fc2, w_class)

    out = jax.block_until_ready(two_fc_layer(x, wr_t, w_tail))
    assert out.shape == (B, num_classes)

    # (1) Strict check against the exact same math the kernel performs
    #     (bf16 reduced_rgb weight, f32 accumulation, folded f32 tail).
    ref_same = jnp.dot(x.astype(jnp.bfloat16), wr_t,
                       preferred_element_type=jnp.float32) @ w_tail
    assert jnp.allclose(out, ref_same, atol=1e-4, rtol=1e-4)

    # (2) Loose check against the exact f32 PyTorch forward; the deviation is
    #     the documented bf16 quantization of the reduced_rgb weight (~1e-3 rel).
    ref_f32 = x @ w_reduced.T @ w_fc1.T @ w_fc2.T @ w_class.T
    assert jnp.allclose(out, ref_f32, atol=5e-3, rtol=5e-2)

    print("KERNEL_OK")
</pallas_src>

<mosaic_0001>
module attributes {stable_mosaic.version = 11 : i64} {
  func.func @two_fc_kernel(%arg0: i32, %arg1: memref<8x1582xf32, #tpu.memory_space<vmem>>, %arg2: memref<1582x128xbf16, #tpu.memory_space<vmem>>, %arg3: memref<128x7xf32, #tpu.memory_space<vmem>>, %arg4: memref<8x7xf32, #tpu.memory_space<vmem>>) attributes {dimension_semantics = [#tpu.dimension_semantics<parallel>], iteration_bounds = array<i64: 1>, scalar_prefetch = 0 : i64, scratch_operands = 0 : i64, tpu.core_type = #tpu.core_type<tc>, window_params = [{transform_indices = @transform_0, window_bounds = array<i64: 8, 1582>}, {pipeline_mode = #tpu.pipeline_mode<synchronous>, transform_indices = @transform_1, window_bounds = array<i64: 1582, 128>}, {pipeline_mode = #tpu.pipeline_mode<synchronous>, transform_indices = @transform_2, window_bounds = array<i64: 128, 7>}, {transform_indices = @transform_3, window_bounds = array<i64: 8, 7>}]} {
    %c0 = arith.constant 0 : index
    %c0_0 = arith.constant 0 : index
    %0 = vector.load %arg1[%c0, %c0_0] : memref<8x1582xf32, #tpu.memory_space<vmem>>, vector<8x1582xf32>
    %1 = arith.truncf %0 : vector<8x1582xf32> to vector<8x1582xbf16>
    %c0_1 = arith.constant 0 : index
    %c0_2 = arith.constant 0 : index
    %2 = vector.load %arg2[%c0_1, %c0_2] : memref<1582x128xbf16, #tpu.memory_space<vmem>>, vector<1582x128xbf16>
    %cst = arith.constant dense<0.000000e+00> : vector<8x128xf32>
    %3 = tpu.matmul %1, %2, %cst {dimension_numbers = #tpu.dot_dimension_numbers<[1], [0], [0], [1], [0, 0, 1, 1], [], []>} : vector<8x1582xbf16>, vector<1582x128xbf16>, vector<8x128xf32> -> vector<8x128xf32>
    %c0_3 = arith.constant 0 : index
    %c0_4 = arith.constant 0 : index
    %4 = vector.load %arg3[%c0_3, %c0_4] : memref<128x7xf32, #tpu.memory_space<vmem>>, vector<128x7xf32>
    %cst_5 = arith.constant dense<0.000000e+00> : vector<8x7xf32>
    %5 = tpu.matmul %3, %4, %cst_5 {dimension_numbers = #tpu.dot_dimension_numbers<[1], [0], [0], [1], [0, 0, 1, 1], [], []>} : vector<8x128xf32>, vector<128x7xf32>, vector<8x7xf32> -> vector<8x7xf32>
    %c0_6 = arith.constant 0 : index
    %c0_7 = arith.constant 0 : index
    %6 = vector.load %arg4[%c0_6, %c0_7] : memref<8x7xf32, #tpu.memory_space<vmem>>, vector<8x7xf32>
    tpu.vector_store %arg4[%c0_6, %c0_7], %5 {strides = array<i32>} : memref<8x7xf32, #tpu.memory_space<vmem>>, vector<8x7xf32>,
    return
  }
  func.func @transform_0(%arg0: i32) -> (i32, i32) {
    %c0_i32 = arith.constant 0 : i32
    %c0_i32_0 = arith.constant 0 : i32
    return %arg0, %c0_i32 : i32, i32
  }
  func.func @transform_1(%arg0: i32) -> (i32, i32) {
    %c0_i32 = arith.constant 0 : i32
    %c0_i32_0 = arith.constant 0 : i32
    %c0_i32_1 = arith.constant 0 : i32
    return %c0_i32, %c0_i32_0 : i32, i32
  }
  func.func @transform_2(%arg0: i32) -> (i32, i32) {
    %c0_i32 = arith.constant 0 : i32
    %c0_i32_0 = arith.constant 0 : i32
    %c0_i32_1 = arith.constant 0 : i32
    return %c0_i32, %c0_i32_0 : i32, i32
  }
  func.func @transform_3(%arg0: i32) -> (i32, i32) {
    %c0_i32 = arith.constant 0 : i32
    %c0_i32_0 = arith.constant 0 : i32
    return %arg0, %c0_i32 : i32, i32
  }
}

</mosaic_0001>

<llo_original>
// kernel: tpu_custom_call.1
$region0: #{tpu_custom_call.1}
  #allocation0 [shape = 'u32[]', space=smem, size = 0x4, offset = 0x4, fixed_abs, tag = 'smem constant byte address 0x4 - core index']
  #allocation1 [shape = 'u32[144,128]{1,0:T(1,128)}', space=vmem, size = 0x12000, scoped, tag = 'internal scratch']
  %s0 = inlined_call_operand.vmem [shape: f32[8,1582], index: 0, kind: input, shape index: {}]
  %s1 = inlined_call_operand.hbm [shape: bf16[1582,128], index: 1, kind: input, shape index: {}]
  %s2 = inlined_call_operand.vmem [shape: f32[128,7], index: 2, kind: input, shape index: {}]
  %s3 = inlined_call_operand.hbm [shape: f32[8,7], index: 3, kind: output, shape index: {}]
  %s4 = sld [smem:[#allocation0]]
  $region26: #{tpu_custom_call.1} parent=0
    _
  %s6 = ssub.s32 1, %s4
  %s7 = scalar_select 0, %s6, %s4
  $region1: #{tpu_custom_call.1} parent=0
    #allocation2 [shape = 'u8[405504]{0}', space=vmem, size = 0x63000, scoped, tag = 'input window, operand 1, single buffered']
    #allocation3 [shape = 's32[1]{0}', space=sflag, size = 0x4, scoped, tag = 'scoped memory for tpu_custom_call.1']
    #allocation4 [shape = 's32[1]{0}', space=sflag, size = 0x4, scoped, tag = 'scoped memory for tpu_custom_call.1']
    #allocation5 [shape = 'u8[4096]{0}', space=vmem, size = 0x1000, scoped, tag = 'output window, operand 0, single buffered']
    %8 = vsyncpa [#allocation3], 0
    %9 = vsyncpa [#allocation4], 0
    // Predicated region
    $region2: #{tpu_custom_call.1} parent=1 // pred_check
      _
    $region3: #{tpu_custom_call.1} parent=1 // pred_check_branch
      %11 = sbr.rel (0) target = $region5
    $region4: #{tpu_custom_call.1} parent=1 // pred_region
      _
    $region5: #{tpu_custom_call.1} parent=1 // pred_fallthru
      _
    // Predicated region
    $region6: #{tpu_custom_call.1} parent=1 // pred_check
      _
    $region7: #{tpu_custom_call.1} parent=1 // pred_check_branch
      %13 = sbr.rel (0) target = $region9
    $region8: #{tpu_custom_call.1} parent=1 // pred_region
      %s15 = ssub.s32 12672, 12672
      %16 = vsyncadd [#allocation3], %s15
      %s17 = sshll.u32 [#allocation2], 4
      %s18 = int_to_ptr.vmem [resolvable:$true] %s17
      %23 = dma.hbm_to_vmem [thread:$0]  %s1, 12672, %s18, [#allocation3], 64, 64, 4
    $region9: #{tpu_custom_call.1} parent=1 // pred_fallthru
      _
    // Predicated region
    $region10: #{tpu_custom_call.1} parent=1 // pred_check
      _
    $region11: #{tpu_custom_call.1} parent=1 // pred_check_branch
      %25 = sbr.rel (0) target = $region13
    $region12: #{tpu_custom_call.1} parent=1 // pred_region
      _
    $region13: #{tpu_custom_call.1} parent=1 // pred_fallthru
      _
    // Predicated region
    $region14: #{tpu_custom_call.1} parent=1 // pred_check
      _
    $region15: #{tpu_custom_call.1} parent=1 // pred_check_branch
      %27 = sbr.rel (0) target = $region17
    $region16: #{tpu_custom_call.1} parent=1 // pred_region
      %28 = dma.done [#allocation3], 12672
    $region17: #{tpu_custom_call.1} parent=1 // pred_fallthru
      _
    %v30 = vld [vmem:[%s0] sm:$0xff]
    %v31 = vld [vmem:[%s0 + $0x8] sm:$0xff]
    %v32 = vld [vmem:[%s0 + $0x10] sm:$0xff]
    %v33 = vld [vmem:[%s0 + $0x18] sm:$0xff]
    %v34 = vld [vmem:[%s0 + $0x20] sm:$0xff]
    %v35 = vld [vmem:[%s0 + $0x28] sm:$0xff]
    %v36 = vld [vmem:[%s0 + $0x30] sm:$0xff]
    %v37 = vld [vmem:[%s0 + $0x38] sm:$0xff]
    %v38 = vld [vmem:[%s0 + $0x40] sm:$0xff]
    %v39 = vld [vmem:[%s0 + $0x48] sm:$0xff]
    %v40 = vld [vmem:[%s0 + $0x50] sm:$0xff]
    %v41 = vld [vmem:[%s0 + $0x58] sm:$0xff]
    %v42 = vld [vmem:[%s0 + $0x60] sm:$0xff]
    %v43 = vpack.c.bf16 %v30, %v30
    %v44 = vpack.c.bf16 %v31, %v31
    %v45 = vpack.c.bf16 %v32, %v32
    %v46 = vpack.c.bf16 %v33, %v33
    %v47 = vpack.c.bf16 %v34, %v34
    %v48 = vpack.c.bf16 %v35, %v35
    %v49 = vpack.c.bf16 %v36, %v36
    %v50 = vpack.c.bf16 %v37, %v37
    %v51 = vpack.c.bf16 %v38, %v38
    %v52 = vpack.c.bf16 %v39, %v39
    %v53 = vpack.c.bf16 %v40, %v40
    %v54 = vpack.c.bf16 %v41, %v41
    %v55 = vpack.c.bf16 %v42, %v42
    %v56 = vld [vmem:[#allocation2] sm:$0xf]
    %v57 = vld [vmem:[#allocation2 + $0x4] sm:$0xf]
    %v58 = vld [vmem:[#allocation2 + $0x8] sm:$0xf]
    %v59 = vld [vmem:[#allocation2 + $0xc] sm:$0xf]
    %v60 = vld [vmem:[#allocation2 + $0x10] sm:$0xf]
    %v61 = vld [vmem:[#allocation2 + $0x14] sm:$0xf]
    %v62 = vld [vmem:[#allocation2 + $0x18] sm:$0xf]
    %v63 = vld [vmem:[#allocation2 + $0x1c] sm:$0xf]
    %v64 = vld [vmem:[#allocation2 + $0x20] sm:$0xf]
    %v65 = vld [vmem:[#allocation2 + $0x24] sm:$0xf]
    %v66 = vld [vmem:[#allocation2 + $0x28] sm:$0xf]
    %v67 = vld [vmem:[#allocation2 + $0x2c] sm:$0xf]
    %v68 = vld [vmem:[#allocation2 + $0x30] sm:$0xf]
    %v69 = vld [vmem:[#allocation2 + $0x34] sm:$0xf]
    %v70 = vld [vmem:[#allocation2 + $0x38] sm:$0xf]
    %v71 = vld [vmem:[#allocation2 + $0x3c] sm:$0xf]
    %v72 = vld [vmem:[#allocation2 + $0x40] sm:$0xf]
    %v73 = vld [vmem:[#allocation2 + $0x44] sm:$0xf]
    %v74 = vld [vmem:[#allocation2 + $0x48] sm:$0xf]
    %v75 = vld [vmem:[#allocation2 + $0x4c] sm:$0xf]
    %v76 = vld [vmem:[#allocation2 + $0x50] sm:$0xf]
    %v77 = vld [vmem:[#allocation2 + $0x54] sm:$0xf]
    %v78 = vld [vmem:[#allocation2 + $0x58] sm:$0xf]
    %v79 = vld [vmem:[#allocation2 + $0x5c] sm:$0xf]
    %v80 = vld [vmem:[#allocation2 + $0x60] sm:$0xf]
    %v81 = vld [vmem:[#allocation2 + $0x64] sm:$0xf]
    %v82 = vld [vmem:[#allocation2 + $0x68] sm:$0xf]
    %v83 = vld [vmem:[#allocation2 + $0x6c] sm:$0xf]
    %v84 = vld [vmem:[#allocation2 + $0x70] sm:$0xf]
    %v85 = vld [vmem:[#allocation2 + $0x74] sm:$0xf]
    %v86 = vld [vmem:[#allocation2 + $0x78] sm:$0xf]
    %v87 = vld [vmem:[#allocation2 + $0x7c] sm:$0xf]
    %v88 = vld [vmem:[#allocation2 + $0x80] sm:$0xf]
    %v89 = vld [vmem:[#allocation2 + $0x84] sm:$0xf]
    %v90 = vld [vmem:[#allocation2 + $0x88] sm:$0xf]
    %v91 = vld [vmem:[#allocation2 + $0x8c] sm:$0xf]
    %v92 = vld [vmem:[#allocation2 + $0x90] sm:$0xf]
    %v93 = vld [vmem:[#allocation2 + $0x94] sm:$0xf]
    %v94 = vld [vmem:[#allocation2 + $0x98] sm:$0xf]
    %v95 = vld [vmem:[#allocation2 + $0x9c] sm:$0xf]
    %v96 = vld [vmem:[#allocation2 + $0xa0] sm:$0xf]
    %v97 = vld [vmem:[#allocation2 + $0xa4] sm:$0xf]
    %v98 = vld [vmem:[#allocation2 + $0xa8] sm:$0xf]
    %v99 = vld [vmem:[#allocation2 + $0xac] sm:$0xf]
    %v100 = vld [vmem:[#allocation2 + $0xb0] sm:$0xf]
    %v101 = vld [vmem:[#allocation2 + $0xb4] sm:$0xf]
    %v102 = vld [vmem:[#allocation2 + $0xb8] sm:$0xf]
    %v103 = vld [vmem:[#allocation2 + $0xbc] sm:$0xf]
    %v104 = vld [vmem:[#allocation2 + $0xc0] sm:$0xf]
    %v105 = vld [vmem:[#allocation2 + $0xc4] sm:$0xf]
    %v106 = vld [vmem:[#allocation2 + $0xc8] sm:$0xf]
    %v107 = vld [vmem:[#allocation2 + $0xcc] sm:$0xf]
    %v108 = vld [vmem:[#allocation2 + $0xd0] sm:$0xf]
    %v109 = vld [vmem:[#allocation2 + $0xd4] sm:$0xf]
    %v110 = vld [vmem:[#allocation2 + $0xd8] sm:$0xf]
    %v111 = vld [vmem:[#allocation2 + $0xdc] sm:$0xf]
    %v112 = vld [vmem:[#allocation2 + $0xe0] sm:$0xf]
    %v113 = vld [vmem:[#allocation2 + $0xe4] sm:$0xf]
    %v114 = vld [vmem:[#allocation2 + $0xe8] sm:$0xf]
    %v115 = vld [vmem:[#allocation2 + $0xec] sm:$0xf]
    %v116 = vld [vmem:[#allocation2 + $0xf0] sm:$0xf]
    %v117 = vld [vmem:[#allocation2 + $0xf4] sm:$0xf]
    %v118 = vld [vmem:[#allocation2 + $0xf8] sm:$0xf]
    %v119 = vld [vmem:[#allocation2 + $0xfc] sm:$0xf]
    %v120 = vld [vmem:[#allocation2 + $0x100] sm:$0xf]
    %v121 = vld [vmem:[#allocation2 + $0x104] sm:$0xf]
    %v122 = vld [vmem:[#allocation2 + $0x108] sm:$0xf]
    %v123 = vld [vmem:[#allocation2 + $0x10c] sm:$0xf]
    %v124 = vld [vmem:[#allocation2 + $0x110] sm:$0xf]
    %v125 = vld [vmem:[#allocation2 + $0x114] sm:$0xf]
    %v126 = vld [vmem:[#allocation2 + $0x118] sm:$0xf]
    %v127 = vld [vmem:[#allocation2 + $0x11c] sm:$0xf]
    %v128 = vld [vmem:[#allocation2 + $0x120] sm:$0xf]
    %v129 = vld [vmem:[#allocation2 + $0x124] sm:$0xf]
    %v130 = vld [vmem:[#allocation2 + $0x128] sm:$0xf]
    %v131 = vld [vmem:[#allocation2 + $0x12c] sm:$0xf]
    %v132 = vld [vmem:[#allocation2 + $0x130] sm:$0xf]
    %v133 = vld [vmem:[#allocation2 + $0x134] sm:$0xf]
    %v134 = vld [vmem:[#allocation2 + $0x138] sm:$0xf]
    %v135 = vld [vmem:[#allocation2 + $0x13c] sm:$0xf]
    %v136 = vld [vmem:[#allocation2 + $0x140] sm:$0xf]
    %v137 = vld [vmem:[#allocation2 + $0x144] sm:$0xf]
    %v138 = vld [vmem:[#allocation2 + $0x148] sm:$0xf]
    %v139 = vld [vmem:[#allocation2 + $0x14c] sm:$0xf]
    %v140 = vld [vmem:[#allocation2 + $0x150] sm:$0xf]
    %v141 = vld [vmem:[#allocation2 + $0x154] sm:$0xf]
    %v142 = vld [vmem:[#allocation2 + $0x158] sm:$0xf]
    %v143 = vld [vmem:[#allocation2 + $0x15c] sm:$0xf]
    %v144 = vld [vmem:[#allocation2 + $0x160] sm:$0xf]
    %v145 = vld [vmem:[#allocation2 + $0x164] sm:$0xf]
    %v146 = vld [vmem:[#allocation2 + $0x168] sm:$0xf]
    %v147 = vld [vmem:[#allocation2 + $0x16c] sm:$0xf]
    %v148 = vld [vmem:[#allocation2 + $0x170] sm:$0xf]
    %v149 = vld [vmem:[#allocation2 + $0x174] sm:$0xf]
    %v150 = vld [vmem:[#allocation2 + $0x178] sm:$0xf]
    %v151 = vld [vmem:[#allocation2 + $0x17c] sm:$0xf]
    %v152 = vld [vmem:[#allocation2 + $0x180] sm:$0xf]
    %v153 = vld [vmem:[#allocation2 + $0x184] sm:$0xf]
    %v154 = vld [vmem:[#allocation2 + $0x188] sm:$0xf]
    %v155 = vld [vmem:[#allocation2 + $0x18c] sm:$0xf]
    %v156 = vld [vmem:[#allocation2 + $0x190] sm:$0xf]
    %v157 = vld [vmem:[#allocation2 + $0x194] sm:$0xf]
    %v158 = vld [vmem:[#allocation2 + $0x198] sm:$0xf]
    %v159 = vld [vmem:[#allocation2 + $0x19c] sm:$0xf]
    %v160 = vld [vmem:[#allocation2 + $0x1a0] sm:$0xf]
    %v161 = vld [vmem:[#allocation2 + $0x1a4] sm:$0xf]
    %v162 = vld [vmem:[#allocation2 + $0x1a8] sm:$0xf]
    %v163 = vld [vmem:[#allocation2 + $0x1ac] sm:$0xf]
    %v164 = vld [vmem:[#allocation2 + $0x1b0] sm:$0xf]
    %v165 = vld [vmem:[#allocation2 + $0x1b4] sm:$0xf]
    %v166 = vld [vmem:[#allocation2 + $0x1b8] sm:$0xf]
    %v167 = vld [vmem:[#allocation2 + $0x1bc] sm:$0xf]
    %v168 = vld [vmem:[#allocation2 + $0x1c0] sm:$0xf]
    %v169 = vld [vmem:[#allocation2 + $0x1c4] sm:$0xf]
    %v170 = vld [vmem:[#allocation2 + $0x1c8] sm:$0xf]
    %v171 = vld [vmem:[#allocation2 + $0x1cc] sm:$0xf]
    %v172 = vld [vmem:[#allocation2 + $0x1d0] sm:$0xf]
    %v173 = vld [vmem:[#allocation2 + $0x1d4] sm:$0xf]
    %v174 = vld [vmem:[#allocation2 + $0x1d8] sm:$0xf]
    %v175 = vld [vmem:[#allocation2 + $0x1dc] sm:$0xf]
    %v176 = vld [vmem:[#allocation2 + $0x1e0] sm:$0xf]
    %v177 = vld [vmem:[#allocation2 + $0x1e4] sm:$0xf]
    %v178 = vld [vmem:[#allocation2 + $0x1e8] sm:$0xf]
    %v179 = vld [vmem:[#allocation2 + $0x1ec] sm:$0xf]
    %v180 = vld [vmem:[#allocation2 + $0x1f0] sm:$0xf]
    %v181 = vld [vmem:[#allocation2 + $0x1f4] sm:$0xf]
    %v182 = vld [vmem:[#allocation2 + $0x1f8] sm:$0xf]
    %v183 = vld [vmem:[#allocation2 + $0x1fc] sm:$0xf]
    %v184 = vld [vmem:[#allocation2 + $0x200] sm:$0xf]
    %v185 = vld [vmem:[#allocation2 + $0x204] sm:$0xf]
    %v186 = vld [vmem:[#allocation2 + $0x208] sm:$0xf]
    %v187 = vld [vmem:[#allocation2 + $0x20c] sm:$0xf]
    %v188 = vld [vmem:[#allocation2 + $0x210] sm:$0xf]
    %v189 = vld [vmem:[#allocation2 + $0x214] sm:$0xf]
    %v190 = vld [vmem:[#allocation2 + $0x218] sm:$0xf]
    %v191 = vld [vmem:[#allocation2 + $0x21c] sm:$0xf]
    %v192 = vld [vmem:[#allocation2 + $0x220] sm:$0xf]
    %v193 = vld [vmem:[#allocation2 + $0x224] sm:$0xf]
    %v194 = vld [vmem:[#allocation2 + $0x228] sm:$0xf]
    %v195 = vld [vmem:[#allocation2 + $0x22c] sm:$0xf]
    %v196 = vld [vmem:[#allocation2 + $0x230] sm:$0xf]
    %v197 = vld [vmem:[#allocation2 + $0x234] sm:$0xf]
    %v198 = vld [vmem:[#allocation2 + $0x238] sm:$0xf]
    %v199 = vld [vmem:[#allocation2 + $0x23c] sm:$0xf]
    %v200 = vld [vmem:[#allocation2 + $0x240] sm:$0xf]
    %v201 = vld [vmem:[#allocation2 + $0x244] sm:$0xf]
    %v202 = vld [vmem:[#allocation2 + $0x248] sm:$0xf]
    %v203 = vld [vmem:[#allocation2 + $0x24c] sm:$0xf]
    %v204 = vld [vmem:[#allocation2 + $0x250] sm:$0xf]
    %v205 = vld [vmem:[#allocation2 + $0x254] sm:$0xf]
    %v206 = vld [vmem:[#allocation2 + $0x258] sm:$0xf]
    %v207 = vld [vmem:[#allocation2 + $0x25c] sm:$0xf]
    %v208 = vld [vmem:[#allocation2 + $0x260] sm:$0xf]
    %v209 = vld [vmem:[#allocation2 + $0x264] sm:$0xf]
    %v210 = vld [vmem:[#allocation2 + $0x268] sm:$0xf]
    %v211 = vld [vmem:[#allocation2 + $0x26c] sm:$0xf]
    %v212 = vld [vmem:[#allocation2 + $0x270] sm:$0xf]
    %v213 = vld [vmem:[#allocation2 + $0x274] sm:$0xf]
    %v214 = vld [vmem:[#allocation2 + $0x278] sm:$0xf]
    %v215 = vld [vmem:[#allocation2 + $0x27c] sm:$0xf]
    %v216 = vld [vmem:[#allocation2 + $0x280] sm:$0xf]
    %v217 = vld [vmem:[#allocation2 + $0x284] sm:$0xf]
    %v218 = vld [vmem:[#allocation2 + $0x288] sm:$0xf]
    %v219 = vld [vmem:[#allocation2 + $0x28c] sm:$0xf]
    %v220 = vld [vmem:[#allocation2 + $0x290] sm:$0xf]
    %v221 = vld [vmem:[#allocation2 + $0x294] sm:$0xf]
    %v222 = vld [vmem:[#allocation2 + $0x298] sm:$0xf]
    %v223 = vld [vmem:[#allocation2 + $0x29c] sm:$0xf]
    %v224 = vld [vmem:[#allocation2 + $0x2a0] sm:$0xf]
    %v225 = vld [vmem:[#allocation2 + $0x2a4] sm:$0xf]
    %v226 = vld [vmem:[#allocation2 + $0x2a8] sm:$0xf]
    %v227 = vld [vmem:[#allocation2 + $0x2ac] sm:$0xf]
    %v228 = vld [vmem:[#allocation2 + $0x2b0] sm:$0xf]
    %v229 = vld [vmem:[#allocation2 + $0x2b4] sm:$0xf]
    %v230 = vld [vmem:[#allocation2 + $0x2b8] sm:$0xf]
    %v231 = vld [vmem:[#allocation2 + $0x2bc] sm:$0xf]
    %v232 = vld [vmem:[#allocation2 + $0x2c0] sm:$0xf]
    %v233 = vld [vmem:[#allocation2 + $0x2c4] sm:$0xf]
    %v234 = vld [vmem:[#allocation2 + $0x2c8] sm:$0xf]
    %v235 = vld [vmem:[#allocation2 + $0x2cc] sm:$0xf]
    %v236 = vld [vmem:[#allocation2 + $0x2d0] sm:$0xf]
    %v237 = vld [vmem:[#allocation2 + $0x2d4] sm:$0xf]
    %v238 = vld [vmem:[#allocation2 + $0x2d8] sm:$0xf]
    %v239 = vld [vmem:[#allocation2 + $0x2dc] sm:$0xf]
    %v240 = vld [vmem:[#allocation2 + $0x2e0] sm:$0xf]
    %v241 = vld [vmem:[#allocation2 + $0x2e4] sm:$0xf]
    %v242 = vld [vmem:[#allocation2 + $0x2e8] sm:$0xf]
    %v243 = vld [vmem:[#allocation2 + $0x2ec] sm:$0xf]
    %v244 = vld [vmem:[#allocation2 + $0x2f0] sm:$0xf]
    %v245 = vld [vmem:[#allocation2 + $0x2f4] sm:$0xf]
    %v246 = vld [vmem:[#allocation2 + $0x2f8] sm:$0xf]
    %v247 = vld [vmem:[#allocation2 + $0x2fc] sm:$0xf]
    %v248 = vld [vmem:[#allocation2 + $0x300] sm:$0xf]
    %v249 = vld [vmem:[#allocation2 + $0x304] sm:$0xf]
    %v250 = vld [vmem:[#allocation2 + $0x308] sm:$0xf]
    %v251 = vld [vmem:[#allocation2 + $0x30c] sm:$0xf]
    %v252 = vld [vmem:[#allocation2 + $0x310] sm:$0xf]
    %v253 = vld [vmem:[#allocation2 + $0x314] sm:$0x7]
    %v452 = vunpack.c.l.b16 %v56
    %v453 = vunpack.c.l.b16 %v57
    %v454 = vunpack.c.l.b16 %v58
    %v455 = vunpack.c.l.b16 %v59
    %v456 = vunpack.c.l.b16 %v60
    %v457 = vunpack.c.l.b16 %v61
    %v458 = vunpack.c.l.b16 %v62
    %v459 = vunpack.c.l.b16 %v63
    %v460 = vunpack.c.l.b16 %v64
    %v461 = vunpack.c.l.b16 %v65
    %v462 = vunpack.c.l.b16 %v66
    %v463 = vunpack.c.l.b16 %v67
    %v464 = vunpack.c.l.b16 %v68
    %v465 = vunpack.c.l.b16 %v69
    %v466 = vunpack.c.l.b16 %v70
    %v467 = vunpack.c.l.b16 %v71
    %v468 = vunpack.c.l.b16 %v72
    %v469 = vunpack.c.l.b16 %v73
    %v470 = vunpack.c.l.b16 %v74
    %v471 = vunpack.c.l.b16 %v75
    %v472 = vunpack.c.l.b16 %v76
    %v473 = vunpack.c.l.b16 %v77
    %v474 = vunpack.c.l.b16 %v78
    %v475 = vunpack.c.l.b16 %v79
    %v476 = vunpack.c.l.b16 %v80
    %v477 = vunpack.c.l.b16 %v81
    %v478 = vunpack.c.l.b16 %v82
    %v479 = vunpack.c.l.b16 %v83
    %v480 = vunpack.c.l.b16 %v84
    %v481 = vunpack.c.l.b16 %v85
    %v482 = vunpack.c.l.b16 %v86
    %v483 = vunpack.c.l.b16 %v87
    %v484 = vunpack.c.l.b16 %v88
    %v485 = vunpack.c.l.b16 %v89
    %v486 = vunpack.c.l.b16 %v90
    %v487 = vunpack.c.l.b16 %v91
    %v488 = vunpack.c.l.b16 %v92
    %v489 = vunpack.c.l.b16 %v93
    %v490 = vunpack.c.l.b16 %v94
    %v491 = vunpack.c.l.b16 %v95
    %v492 = vunpack.c.l.b16 %v96
    %v493 = vunpack.c.l.b16 %v97
    %v494 = vunpack.c.l.b16 %v98
    %v495 = vunpack.c.l.b16 %v99
    %v496 = vunpack.c.l.b16 %v100
    %v497 = vunpack.c.l.b16 %v101
    %v498 = vunpack.c.l.b16 %v102
    %v499 = vunpack.c.l.b16 %v103
    %v500 = vunpack.c.l.b16 %v104
    %v501 = vunpack.c.l.b16 %v105
    %v502 = vunpack.c.l.b16 %v106
    %v503 = vunpack.c.l.b16 %v107
    %v504 = vunpack.c.l.b16 %v108
    %v505 = vunpack.c.l.b16 %v109
    %v506 = vunpack.c.l.b16 %v110
    %v507 = vunpack.c.l.b16 %v111
    %v508 = vunpack.c.l.b16 %v112
    %v509 = vunpack.c.l.b16 %v113
    %v510 = vunpack.c.l.b16 %v114
    %v511 = vunpack.c.l.b16 %v115
    %v512 = vunpack.c.l.b16 %v116
    %v513 = vunpack.c.l.b16 %v117
    %v514 = vunpack.c.l.b16 %v118
    %v515 = vunpack.c.l.b16 %v119
    %v516 = vunpack.c.l.b16 %v120
    %v517 = vunpack.c.l.b16 %v121
    %v518 = vunpack.c.l.b16 %v122
    %v519 = vunpack.c.l.b16 %v123
    %v520 = vunpack.c.l.b16 %v124
    %v521 = vunpack.c.l.b16 %v125
    %v522 = vunpack.c.l.b16 %v126
    %v523 = vunpack.c.l.b16 %v127
    %v524 = vunpack.c.l.b16 %v128
    %v525 = vunpack.c.l.b16 %v129
    %v526 = vunpack.c.l.b16 %v130
    %v527 = vunpack.c.l.b16 %v131
    %v528 = vunpack.c.l.b16 %v132
    %v529 = vunpack.c.l.b16 %v133
    %v530 = vunpack.c.l.b16 %v134
    %v531 = vunpack.c.l.b16 %v135
    %v532 = vunpack.c.l.b16 %v136
    %v533 = vunpack.c.l.b16 %v137
    %v534 = vunpack.c.l.b16 %v138
    %v535 = vunpack.c.l.b16 %v139
    %v536 = vunpack.c.l.b16 %v140
    %v537 = vunpack.c.l.b16 %v141
    %v538 = vunpack.c.l.b16 %v142
    %v539 = vunpack.c.l.b16 %v143
    %v540 = vunpack.c.l.b16 %v144
    %v541 = vunpack.c.l.b16 %v145
    %v542 = vunpack.c.l.b16 %v146
    %v543 = vunpack.c.l.b16 %v147
    %v544 = vunpack.c.l.b16 %v148
    %v545 = vunpack.c.l.b16 %v149
    %v546 = vunpack.c.l.b16 %v150
    %v547 = vunpack.c.l.b16 %v151
    %v548 = vunpack.c.l.b16 %v152
    %v549 = vunpack.c.l.b16 %v153
    %v550 = vunpack.c.l.b16 %v154
    %v551 = vunpack.c.l.b16 %v155
    %v552 = vunpack.c.l.b16 %v156
    %v553 = vunpack.c.l.b16 %v157
    %v554 = vunpack.c.l.b16 %v158
    %v555 = vunpack.c.l.b16 %v159
    %v556 = vunpack.c.l.b16 %v160
    %v557 = vunpack.c.l.b16 %v161
    %v558 = vunpack.c.l.b16 %v162
    %v559 = vunpack.c.l.b16 %v163
    %v560 = vunpack.c.l.b16 %v164
    %v561 = vunpack.c.l.b16 %v165
    %v562 = vunpack.c.l.b16 %v166
    %v563 = vunpack.c.l.b16 %v167
    %v564 = vunpack.c.l.b16 %v168
    %v565 = vunpack.c.l.b16 %v169
    %v566 = vunpack.c.l.b16 %v170
    %v567 = vunpack.c.l.b16 %v171
    %v568 = vunpack.c.l.b16 %v172
    %v569 = vunpack.c.l.b16 %v173
    %v570 = vunpack.c.l.b16 %v174
    %v571 = vunpack.c.l.b16 %v175
    %v572 = vunpack.c.l.b16 %v176
    %v573 = vunpack.c.l.b16 %v177
    %v574 = vunpack.c.l.b16 %v178
    %v575 = vunpack.c.l.b16 %v179
    %v576 = vunpack.c.l.b16 %v180
    %v577 = vunpack.c.l.b16 %v181
    %v578 = vunpack.c.l.b16 %v182
    %v579 = vunpack.c.l.b16 %v183
    %v580 = vunpack.c.l.b16 %v184
    %v581 = vunpack.c.l.b16 %v185
    %v582 = vunpack.c.l.b16 %v186
    %v583 = vunpack.c.l.b16 %v187
    %v584 = vunpack.c.l.b16 %v188
    %v585 = vunpack.c.l.b16 %v189
    %v586 = vunpack.c.l.b16 %v190
    %v587 = vunpack.c.l.b16 %v191
    %v588 = vunpack.c.l.b16 %v192
    %v589 = vunpack.c.l.b16 %v193
    %v590 = vunpack.c.l.b16 %v194
    %v591 = vunpack.c.l.b16 %v195
    %v592 = vunpack.c.l.b16 %v196
    %v593 = vunpack.c.l.b16 %v197
    %v594 = vunpack.c.l.b16 %v198
    %v595 = vunpack.c.l.b16 %v199
    %v596 = vunpack.c.l.b16 %v200
    %v597 = vunpack.c.l.b16 %v201
    %v598 = vunpack.c.l.b16 %v202
    %v599 = vunpack.c.l.b16 %v203
    %v600 = vunpack.c.l.b16 %v204
    %v601 = vunpack.c.l.b16 %v205
    %v602 = vunpack.c.l.b16 %v206
    %v603 = vunpack.c.l.b16 %v207
    %v604 = vunpack.c.l.b16 %v208
    %v605 = vunpack.c.l.b16 %v209
    %v606 = vunpack.c.l.b16 %v210
    %v607 = vunpack.c.l.b16 %v211
    %v608 = vunpack.c.l.b16 %v212
    %v609 = vunpack.c.l.b16 %v213
    %v610 = vunpack.c.l.b16 %v214
    %v611 = vunpack.c.l.b16 %v215
    %v612 = vunpack.c.l.b16 %v216
    %v613 = vunpack.c.l.b16 %v217
    %v614 = vunpack.c.l.b16 %v218
    %v615 = vunpack.c.l.b16 %v219
    %v616 = vunpack.c.l.b16 %v220
    %v617 = vunpack.c.l.b16 %v221
    %v618 = vunpack.c.l.b16 %v222
    %v619 = vunpack.c.l.b16 %v223
    %v620 = vunpack.c.l.b16 %v224
    %v621 = vunpack.c.l.b16 %v225
    %v622 = vunpack.c.l.b16 %v226
    %v623 = vunpack.c.l.b16 %v227
    %v624 = vunpack.c.l.b16 %v228
    %v625 = vunpack.c.l.b16 %v229
    %v626 = vunpack.c.l.b16 %v230
    %v627 = vunpack.c.l.b16 %v231
    %v628 = vunpack.c.l.b16 %v232
    %v629 = vunpack.c.l.b16 %v233
    %v630 = vunpack.c.l.b16 %v234
    %v631 = vunpack.c.l.b16 %v235
    %v632 = vunpack.c.l.b16 %v236
    %v633 = vunpack.c.l.b16 %v237
    %v634 = vunpack.c.l.b16 %v238
    %v635 = vunpack.c.l.b16 %v239
    %v636 = vunpack.c.l.b16 %v240
    %v637 = vunpack.c.l.b16 %v241
    %v638 = vunpack.c.l.b16 %v242
    %v639 = vunpack.c.l.b16 %v243
    %v640 = vunpack.c.l.b16 %v244
    %v641 = vunpack.c.l.b16 %v245
    %v642 = vunpack.c.l.b16 %v246
    %v643 = vunpack.c.l.b16 %v247
    %v644 = vunpack.c.l.b16 %v248
    %v645 = vunpack.c.l.b16 %v249
    %v646 = vunpack.c.l.b16 %v250
    %v647 = vunpack.c.l.b16 %v251
    %v648 = vunpack.c.l.b16 %v252
    %v649 = vunpack.c.l.b16 %v253
    %v650 = vpack.c.b16 %v453, %v452
    %v651 = vpack.c.b16 %v455, %v454
    %v652 = vpack.c.b16 %v457, %v456
    %v653 = vpack.c.b16 %v459, %v458
    %v654 = vpack.c.b16 %v461, %v460
    %v655 = vpack.c.b16 %v463, %v462
    %v656 = vpack.c.b16 %v465, %v464
    %v657 = vpack.c.b16 %v467, %v466
    %v658 = vpack.c.b16 %v469, %v468
    %v659 = vpack.c.b16 %v471, %v470
    %v660 = vpack.c.b16 %v473, %v472
    %v661 = vpack.c.b16 %v475, %v474
    %v662 = vpack.c.b16 %v477, %v476
    %v663 = vpack.c.b16 %v479, %v478
    %v664 = vpack.c.b16 %v481, %v480
    %v665 = vpack.c.b16 %v483, %v482
    %v666 = vpack.c.b16 %v485, %v484
    %v667 = vpack.c.b16 %v487, %v486
    %v668 = vpack.c.b16 %v489, %v488
    %v669 = vpack.c.b16 %v491, %v490
    %v670 = vpack.c.b16 %v493, %v492
    %v671 = vpack.c.b16 %v495, %v494
    %v672 = vpack.c.b16 %v497, %v496
    %v673 = vpack.c.b16 %v499, %v498
    %v674 = vpack.c.b16 %v501, %v500
    %v675 = vpack.c.b16 %v503, %v502
    %v676 = vpack.c.b16 %v505, %v504
    %v677 = vpack.c.b16 %v507, %v506
    %v678 = vpack.c.b16 %v509, %v508
    %v679 = vpack.c.b16 %v511, %v510
    %v680 = vpack.c.b16 %v513, %v512
    %v681 = vpack.c.b16 %v515, %v514
    %v682 = vpack.c.b16 %v517, %v516
    %v683 = vpack.c.b16 %v519, %v518
    %v684 = vpack.c.b16 %v521, %v520
    %v685 = vpack.c.b16 %v523, %v522
    %v686 = vpack.c.b16 %v525, %v524
    %v687 = vpack.c.b16 %v527, %v526
    %v688 = vpack.c.b16 %v529, %v528
    %v689 = vpack.c.b16 %v531, %v530
    %v690 = vpack.c.b16 %v533, %v532
    %v691 = vpack.c.b16 %v535, %v534
    %v692 = vpack.c.b16 %v537, %v536
    %v693 = vpack.c.b16 %v539, %v538
    %v694 = vpack.c.b16 %v541, %v540
    %v695 = vpack.c.b16 %v543, %v542
    %v696 = vpack.c.b16 %v545, %v544
    %v697 = vpack.c.b16 %v547, %v546
    %v698 = vpack.c.b16 %v549, %v548
    %v699 = vpack.c.b16 %v551, %v550
    %v700 = vpack.c.b16 %v553, %v552
    %v701 = vpack.c.b16 %v555, %v554
    %v702 = vpack.c.b16 %v557, %v556
    %v703 = vpack.c.b16 %v559, %v558
    %v704 = vpack.c.b16 %v561, %v560
    %v705 = vpack.c.b16 %v563, %v562
    %v706 = vpack.c.b16 %v565, %v564
    %v707 = vpack.c.b16 %v567, %v566
    %v708 = vpack.c.b16 %v569, %v568
    %v709 = vpack.c.b16 %v571, %v570
    %v710 = vpack.c.b16 %v573, %v572
    %v711 = vpack.c.b16 %v575, %v574
    %v712 = vpack.c.b16 %v577, %v576
    %v713 = vpack.c.b16 %v579, %v578
    %v714 = vpack.c.b16 %v581, %v580
    %v715 = vpack.c.b16 %v583, %v582
    %v716 = vpack.c.b16 %v585, %v584
    %v717 = vpack.c.b16 %v587, %v586
    %v718 = vpack.c.b16 %v589, %v588
    %v719 = vpack.c.b16 %v591, %v590
    %v720 = vpack.c.b16 %v593, %v592
    %v721 = vpack.c.b16 %v595, %v594
    %v722 = vpack.c.b16 %v597, %v596
    %v723 = vpack.c.b16 %v599, %v598
    %v724 = vpack.c.b16 %v601, %v600
    %v725 = vpack.c.b16 %v603, %v602
    %v726 = vpack.c.b16 %v605, %v604
    %v727 = vpack.c.b16 %v607, %v606
    %v728 = vpack.c.b16 %v609, %v608
    %v729 = vpack.c.b16 %v611, %v610
    %v730 = vpack.c.b16 %v613, %v612
    %v731 = vpack.c.b16 %v615, %v614
    %v732 = vpack.c.b16 %v617, %v616
    %v733 = vpack.c.b16 %v619, %v618
    %v734 = vpack.c.b16 %v621, %v620
    %v735 = vpack.c.b16 %v623, %v622
    %v736 = vpack.c.b16 %v625, %v624
    %v737 = vpack.c.b16 %v627, %v626
    %v738 = vpack.c.b16 %v629, %v628
    %v739 = vpack.c.b16 %v631, %v630
    %v740 = vpack.c.b16 %v633, %v632
    %v741 = vpack.c.b16 %v635, %v634
    %v742 = vpack.c.b16 %v637, %v636
    %v743 = vpack.c.b16 %v639, %v638
    %v744 = vpack.c.b16 %v641, %v640
    %v745 = vpack.c.b16 %v643, %v642
    %v746 = vpack.c.b16 %v645, %v644
    %v747 = vpack.c.b16 %v647, %v646
    %v748 = vpack.c.b16 %v649, %v648
    %vm847 = vcmask 375808
    %v849 = vsel %vm847, %v55, 0
    %vm851 = vcmask 1046528
    %v853 = vsel %vm851, %v748, 0
    %855 = vmatprep.subr.bf16.mxu0 0
    %856 = vmatpush1.bf16.msra.mxu0 %v650
    %857 = vmatprep.subr.bf16.mxu0 0
    %858 = vmatpush1.bf16.msra.mxu0 %v651
    %859 = vmatprep.subr.bf16.mxu0 0
    %860 = vmatpush1.bf16.msra.mxu0 %v652
    %861 = vmatprep.subr.bf16.mxu0 0
    %862 = vmatpush1.bf16.msra.mxu0 %v653
    %863 = vmatprep.subr.bf16.mxu0 0
    %864 = vmatpush1.bf16.msra.mxu0 %v654
    %865 = vmatprep.subr.bf16.mxu0 0
    %866 = vmatpush1.bf16.msra.mxu0 %v655
    %867 = vmatprep.subr.bf16.mxu0 0
    %868 = vmatpush1.bf16.msra.mxu0 %v656
    %869 = vmatprep.subr.bf16.mxu0 0
    %870 = vmatpush1.bf16.msra.mxu0 %v657
    %871 = vmatprep.subr.bf16.mxu0 0
    %872 = vmatpush1.bf16.msra.mxu0 %v658
    %873 = vmatprep.subr.bf16.mxu0 0
    %874 = vmatpush1.bf16.msra.mxu0 %v659
    %875 = vmatprep.subr.bf16.mxu0 0
    %876 = vmatpush1.bf16.msra.mxu0 %v660
    %877 = vmatprep.subr.bf16.mxu0 0
    %878 = vmatpush1.bf16.msra.mxu0 %v661
    %879 = vmatprep.subr.bf16.mxu0 0
    %880 = vmatpush1.bf16.msra.mxu0 %v662
    %881 = vmatprep.subr.bf16.mxu0 0
    %882 = vmatpush1.bf16.msra.mxu0 %v663
    %883 = vmatprep.subr.bf16.mxu0 0
    %884 = vmatpush1.bf16.msra.mxu0 %v664
    %885 = vmatprep.subr.bf16.mxu0 0
    %886 = vmatpush1.bf16.msra.mxu0 %v665
    %887 = vmatprep.mubr.bf16.mxu0 %v44
    %888 = vmatmul.mubr.bf16.gmra.mrb[0].mxu0 %v43
    %v889 = vpop.f32.mrb[0].mxu0
    %v890 = vadd.f32 0.0, %v889
    %v891 = vpop.f32.mrb[0].mxu0
    %v892 = vpop.f32.mrb[0].mxu0
    %v893 = vpop.f32.mrb[0].mxu0
    %894 = vdwg.mxu0
    %895 = vmatprep.subr.bf16.mxu0 0
    %896 = vmatpush1.bf16.msra.mxu0 %v666
    %897 = vmatprep.subr.bf16.mxu0 0
    %898 = vmatpush1.bf16.msra.mxu0 %v667
    %899 = vmatprep.subr.bf16.mxu0 0
    %900 = vmatpush1.bf16.msra.mxu0 %v668
    %901 = vmatprep.subr.bf16.mxu0 0
    %902 = vmatpush1.bf16.msra.mxu0 %v669
    %903 = vmatprep.subr.bf16.mxu0 0
    %904 = vmatpush1.bf16.msra.mxu0 %v670
    %905 = vmatprep.subr.bf16.mxu0 0
    %906 = vmatpush1.bf16.msra.mxu0 %v671
    %907 = vmatprep.subr.bf16.mxu0 0
    %908 = vmatpush1.bf16.msra.mxu0 %v672
    %909 = vmatprep.subr.bf16.mxu0 0
    %910 = vmatpush1.bf16.msra.mxu0 %v673
    %911 = vmatprep.subr.bf16.mxu0 0
    %912 = vmatpush1.bf16.msra.mxu0 %v674
    %913 = vmatprep.subr.bf16.mxu0 0
    %914 = vmatpush1.bf16.msra.mxu0 %v675
    %915 = vmatprep.subr.bf16.mxu0 0
    %916 = vmatpush1.bf16.msra.mxu0 %v676
    %917 = vmatprep.subr.bf16.mxu0 0
    %918 = vmatpush1.bf16.msra.mxu0 %v677
    %919 = vmatprep.subr.bf16.mxu0 0
    %920 = vmatpush1.bf16.msra.mxu0 %v678
    %921 = vmatprep.subr.bf16.mxu0 0
    %922 = vmatpush1.bf16.msra.mxu0 %v679
    %923 = vmatprep.subr.bf16.mxu0 0
    %924 = vmatpush1.bf16.msra.mxu0 %v680
    %925 = vmatprep.subr.bf16.mxu0 0
    %926 = vmatpush1.bf16.msra.mxu0 %v681
    %927 = vmatprep.mubr.bf16.mxu0 %v46
    %928 = vmatmul.mubr.bf16.gmra.mrb[0].mxu0 %v45
    %v929 = vpop.f32.mrb[0].mxu0
    %v930 = vadd.f32 %v890, %v929
    %v931 = vpop.f32.mrb[0].mxu0
    %v932 = vpop.f32.mrb[0].mxu0
    %v933 = vpop.f32.mrb[0].mxu0
    %934 = vdwg.mxu0
    %935 = vmatprep.subr.bf16.mxu0 0
    %936 = vmatpush1.bf16.msra.mxu0 %v682
    %937 = vmatprep.subr.bf16.mxu0 0
    %938 = vmatpush1.bf16.msra.mxu0 %v683
    %939 = vmatprep.subr.bf16.mxu0 0
    %940 = vmatpush1.bf16.msra.mxu0 %v684
    %941 = vmatprep.subr.bf16.mxu0 0
    %942 = vmatpush1.bf16.msra.mxu0 %v685
    %943 = vmatprep.subr.bf16.mxu0 0
    %944 = vmatpush1.bf16.msra.mxu0 %v686
    %945 = vmatprep.subr.bf16.mxu0 0
    %946 = vmatpush1.bf16.msra.mxu0 %v687
    %947 = vmatprep.subr.bf16.mxu0 0
    %948 = vmatpush1.bf16.msra.mxu0 %v688
    %949 = vmatprep.subr.bf16.mxu0 0
    %950 = vmatpush1.bf16.msra.mxu0 %v689
    %951 = vmatprep.subr.bf16.mxu0 0
    %952 = vmatpush1.bf16.msra.mxu0 %v690
    %953 = vmatprep.subr.bf16.mxu0 0
    %954 = vmatpush1.bf16.msra.mxu0 %v691
    %955 = vmatprep.subr.bf16.mxu0 0
    %956 = vmatpush1.bf16.msra.mxu0 %v692
    %957 = vmatprep.subr.bf16.mxu0 0
    %958 = vmatpush1.bf16.msra.mxu0 %v693
    %959 = vmatprep.subr.bf16.mxu0 0
    %960 = vmatpush1.bf16.msra.mxu0 %v694
    %961 = vmatprep.subr.bf16.mxu0 0
    %962 = vmatpush1.bf16.msra.mxu0 %v695
    %963 = vmatprep.subr.bf16.mxu0 0
    %964 = vmatpush1.bf16.msra.mxu0 %v696
    %965 = vmatprep.subr.bf16.mxu0 0
    %966 = vmatpush1.bf16.msra.mxu0 %v697
    %967 = vmatprep.mubr.bf16.mxu0 %v48
    %968 = vmatmul.mubr.bf16.gmra.mrb[0].mxu0 %v47
    %v969 = vpop.f32.mrb[0].mxu0
    %v970 = vadd.f32 %v930, %v969
    %v971 = vpop.f32.mrb[0].mxu0
    %v972 = vpop.f32.mrb[0].mxu0
    %v973 = vpop.f32.mrb[0].mxu0
    %974 = vdwg.mxu0
    %975 = vmatprep.subr.bf16.mxu0 0
    %976 = vmatpush1.bf16.msra.mxu0 %v698
    %977 = vmatprep.subr.bf16.mxu0 0
    %978 = vmatpush1.bf16.msra.mxu0 %v699
    %979 = vmatprep.subr.bf16.mxu0 0
    %980 = vmatpush1.bf16.msra.mxu0 %v700
    %981 = vmatprep.subr.bf16.mxu0 0
    %982 = vmatpush1.bf16.msra.mxu0 %v701
    %983 = vmatprep.subr.bf16.mxu0 0
    %984 = vmatpush1.bf16.msra.mxu0 %v702
    %985 = vmatprep.subr.bf16.mxu0 0
    %986 = vmatpush1.bf16.msra.mxu0 %v703
    %987 = vmatprep.subr.bf16.mxu0 0
    %988 = vmatpush1.bf16.msra.mxu0 %v704
    %989 = vmatprep.subr.bf16.mxu0 0
    %990 = vmatpush1.bf16.msra.mxu0 %v705
    %991 = vmatprep.subr.bf16.mxu0 0
    %992 = vmatpush1.bf16.msra.mxu0 %v706
    %993 = vmatprep.subr.bf16.mxu0 0
    %994 = vmatpush1.bf16.msra.mxu0 %v707
    %995 = vmatprep.subr.bf16.mxu0 0
    %996 = vmatpush1.bf16.msra.mxu0 %v708
    %997 = vmatprep.subr.bf16.mxu0 0
    %998 = vmatpush1.bf16.msra.mxu0 %v709
    %999 = vmatprep.subr.bf16.mxu0 0
    %1000 = vmatpush1.bf16.msra.mxu0 %v710
    %1001 = vmatprep.subr.bf16.mxu0 0
    %1002 = vmatpush1.bf16.msra.mxu0 %v711
    %1003 = vmatprep.subr.bf16.mxu0 0
    %1004 = vmatpush1.bf16.msra.mxu0 %v712
    %1005 = vmatprep.subr.bf16.mxu0 0
    %1006 = vmatpush1.bf16.msra.mxu0 %v713
    %1007 = vmatprep.mubr.bf16.mxu0 %v50
    %1008 = vmatmul.mubr.bf16.gmra.mrb[0].mxu0 %v49
    %v1009 = vpop.f32.mrb[0].mxu0
    %v1010 = vadd.f32 %v970, %v1009
    %v1011 = vpop.f32.mrb[0].mxu0
    %v1012 = vpop.f32.mrb[0].mxu0
    %v1013 = vpop.f32.mrb[0].mxu0
    %1014 = vdwg.mxu0
    %1015 = vmatprep.subr.bf16.mxu0 0
    %1016 = vmatpush1.bf16.msra.mxu0 %v714
    %1017 = vmatprep.subr.bf16.mxu0 0
    %1018 = vmatpush1.bf16.msra.mxu0 %v715
    %1019 = vmatprep.subr.bf16.mxu0 0
    %1020 = vmatpush1.bf16.msra.mxu0 %v716
    %1021 = vmatprep.subr.bf16.mxu0 0
    %1022 = vmatpush1.bf16.msra.mxu0 %v717
    %1023 = vmatprep.subr.bf16.mxu0 0
    %1024 = vmatpush1.bf16.msra.mxu0 %v718
    %1025 = vmatprep.subr.bf16.mxu0 0
    %1026 = vmatpush1.bf16.msra.mxu0 %v719
    %1027 = vmatprep.subr.bf16.mxu0 0
    %1028 = vmatpush1.bf16.msra.mxu0 %v720
    %1029 = vmatprep.subr.bf16.mxu0 0
    %1030 = vmatpush1.bf16.msra.mxu0 %v721
    %1031 = vmatprep.subr.bf16.mxu0 0
    %1032 = vmatpush1.bf16.msra.mxu0 %v722
    %1033 = vmatprep.subr.bf16.mxu0 0
    %1034 = vmatpush1.bf16.msra.mxu0 %v723
    %1035 = vmatprep.subr.bf16.mxu0 0
    %1036 = vmatpush1.bf16.msra.mxu0 %v724
    %1037 = vmatprep.subr.bf16.mxu0 0
    %1038 = vmatpush1.bf16.msra.mxu0 %v725
    %1039 = vmatprep.subr.bf16.mxu0 0
    %1040 = vmatpush1.bf16.msra.mxu0 %v726
    %1041 = vmatprep.subr.bf16.mxu0 0
    %1042 = vmatpush1.bf16.msra.mxu0 %v727
    %1043 = vmatprep.subr.bf16.mxu0 0
    %1044 = vmatpush1.bf16.msra.mxu0 %v728
    %1045 = vmatprep.subr.bf16.mxu0 0
    %1046 = vmatpush1.bf16.msra.mxu0 %v729
    %1047 = vmatprep.mubr.bf16.mxu0 %v52
    %1048 = vmatmul.mubr.bf16.gmra.mrb[0].mxu0 %v51
    %v1049 = vpop.f32.mrb[0].mxu0
    %v1050 = vadd.f32 %v1010, %v1049
    %v1051 = vpop.f32.mrb[0].mxu0
    %v1052 = vpop.f32.mrb[0].mxu0
    %v1053 = vpop.f32.mrb[0].mxu0
    %1054 = vdwg.mxu0
    %1055 = vmatprep.subr.bf16.mxu0 0
    %1056 = vmatpush1.bf16.msra.mxu0 %v730
    %1057 = vmatprep.subr.bf16.mxu0 0
    %1058 = vmatpush1.bf16.msra.mxu0 %v731
    %1059 = vmatprep.subr.bf16.mxu0 0
    %1060 = vmatpush1.bf16.msra.mxu0 %v732
    %1061 = vmatprep.subr.bf16.mxu0 0
    %1062 = vmatpush1.bf16.msra.mxu0 %v733
    %1063 = vmatprep.subr.bf16.mxu0 0
    %1064 = vmatpush1.bf16.msra.mxu0 %v734
    %1065 = vmatprep.subr.bf16.mxu0 0
    %1066 = vmatpush1.bf16.msra.mxu0 %v735
    %1067 = vmatprep.subr.bf16.mxu0 0
    %1068 = vmatpush1.bf16.msra.mxu0 %v736
    %1069 = vmatprep.subr.bf16.mxu0 0
    %1070 = vmatpush1.bf16.msra.mxu0 %v737
    %1071 = vmatprep.subr.bf16.mxu0 0
    %1072 = vmatpush1.bf16.msra.mxu0 %v738
    %1073 = vmatprep.subr.bf16.mxu0 0
    %1074 = vmatpush1.bf16.msra.mxu0 %v739
    %1075 = vmatprep.subr.bf16.mxu0 0
    %1076 = vmatpush1.bf16.msra.mxu0 %v740
    %1077 = vmatprep.subr.bf16.mxu0 0
    %1078 = vmatpush1.bf16.msra.mxu0 %v741
    %1079 = vmatprep.subr.bf16.mxu0 0
    %1080 = vmatpush1.bf16.msra.mxu0 %v742
    %1081 = vmatprep.subr.bf16.mxu0 0
    %1082 = vmatpush1.bf16.msra.mxu0 %v743
    %1083 = vmatprep.subr.bf16.mxu0 0
    %1084 = vmatpush1.bf16.msra.mxu0 %v744
    %1085 = vmatprep.subr.bf16.mxu0 0
    %1086 = vmatpush1.bf16.msra.mxu0 %v745
    %1087 = vmatprep.mubr.bf16.mxu0 %v54
    %1088 = vmatmul.mubr.bf16.gmra.mrb[0].mxu0 %v53
    %v1089 = vpop.f32.mrb[0].mxu0
    %v1090 = vadd.f32 %v1050, %v1089
    %v1091 = vpop.f32.mrb[0].mxu0
    %v1092 = vpop.f32.mrb[0].mxu0
    %v1093 = vpop.f32.mrb[0].mxu0
    %1094 = vdwg.mxu0
    %1095 = vmatprep.subr.bf16.mxu0 0
    %1096 = vmatpush1.bf16.msra.mxu0 %v746
    %1097 = vmatprep.subr.bf16.mxu0 0
    %1098 = vmatpush1.bf16.msra.mxu0 %v747
    %1099 = vmatprep.subr.bf16.mxu0 0
    %1100 = vmatpush1.bf16.msra.mxu0 %v853
    %1101 = vmatprep.subr.bf16.mxu0 0
    %1102 = vmatpush1.bf16.msra.mxu0 0
    %1103 = vmatprep.subr.bf16.mxu0 0
    %1104 = vmatpush1.bf16.msra.mxu0 0
    %1105 = vmatprep.subr.bf16.mxu0 0
    %1106 = vmatpush1.bf16.msra.mxu0 0
    %1107 = vmatprep.subr.bf16.mxu0 0
    %1108 = vmatpush1.bf16.msra.mxu0 0
    %1109 = vmatprep.subr.bf16.mxu0 0
    %1110 = vmatpush1.bf16.msra.mxu0 0
    %1111 = vmatprep.subr.bf16.mxu0 0
    %1112 = vmatpush1.bf16.msra.mxu0 0
    %1113 = vmatprep.subr.bf16.mxu0 0
    %1114 = vmatpush1.bf16.msra.mxu0 0
    %1115 = vmatprep.subr.bf16.mxu0 0
    %1116 = vmatpush1.bf16.msra.mxu0 0
    %1117 = vmatprep.subr.bf16.mxu0 0
    %1118 = vmatpush1.bf16.msra.mxu0 0
    %1119 = vmatprep.subr.bf16.mxu0 0
    %1120 = vmatpush1.bf16.msra.mxu0 0
    %1121 = vmatprep.subr.bf16.mxu0 0
    %1122 = vmatpush1.bf16.msra.mxu0 0
    %1123 = vmatprep.subr.bf16.mxu0 0
    %1124 = vmatpush1.bf16.msra.mxu0 0
    %1125 = vmatprep.subr.bf16.mxu0 0
    %1126 = vmatpush1.bf16.msra.mxu0 0
    %1127 = vmatprep.mubr.bf16.mxu0 0
    %1128 = vmatmul.mubr.bf16.gmra.mrb[0].mxu0 %v849
    %v1129 = vpop.f32.mrb[0].mxu0
    %v1130 = vadd.f32 %v1090, %v1129
    %v1131 = vpop.f32.mrb[0].mxu0
    %v1132 = vpop.f32.mrb[0].mxu0
    %v1133 = vpop.f32.mrb[0].mxu0
    %1134 = vdwg.mxu0
    %v1135 = vld [vmem:[%s2] sm:$0xff]
    %v1136 = vld [vmem:[%s2 + $0x8] sm:$0xff]
    %v1137 = vld [vmem:[%s2 + $0x10] sm:$0xff]
    %v1138 = vld [vmem:[%s2 + $0x18] sm:$0xff]
    %v1139 = vld [vmem:[%s2 + $0x20] sm:$0xff]
    %v1140 = vld [vmem:[%s2 + $0x28] sm:$0xff]
    %v1141 = vld [vmem:[%s2 + $0x30] sm:$0xff]
    %v1142 = vld [vmem:[%s2 + $0x38] sm:$0xff]
    %v1143 = vld [vmem:[%s2 + $0x40] sm:$0xff]
    %v1144 = vld [vmem:[%s2 + $0x48] sm:$0xff]
    %v1145 = vld [vmem:[%s2 + $0x50] sm:$0xff]
    %v1146 = vld [vmem:[%s2 + $0x58] sm:$0xff]
    %v1147 = vld [vmem:[%s2 + $0x60] sm:$0xff]
    %v1148 = vld [vmem:[%s2 + $0x68] sm:$0xff]
    %v1149 = vld [vmem:[%s2 + $0x70] sm:$0xff]
    %v1150 = vld [vmem:[%s2 + $0x78] sm:$0xff]
    %1151 = vmatprep.subr.mxu0 0.0
    %1152 = vmatpush1.msra.mxu0 %v1135
    %1153 = vmatprep.subr.mxu0 0.0
    %1154 = vmatpush1.msra.mxu0 %v1136
    %1155 = vmatprep.subr.mxu0 0.0
    %1156 = vmatpush1.msra.mxu0 %v1137
    %1157 = vmatprep.subr.mxu0 0.0
    %1158 = vmatpush1.msra.mxu0 %v1138
    %1159 = vmatprep.subr.mxu0 0.0
    %1160 = vmatpush1.msra.mxu0 %v1139
    %1161 = vmatprep.subr.mxu0 0.0
    %1162 = vmatpush1.msra.mxu0 %v1140
    %1163 = vmatprep.subr.mxu0 0.0
    %1164 = vmatpush1.msra.mxu0 %v1141
    %1165 = vmatprep.subr.mxu0 0.0
    %1166 = vmatpush1.msra.mxu0 %v1142
    %1167 = vmatprep.subr.mxu0 0.0
    %1168 = vmatpush1.msra.mxu0 %v1143
    %1169 = vmatprep.subr.mxu0 0.0
    %1170 = vmatpush1.msra.mxu0 %v1144
    %1171 = vmatprep.subr.mxu0 0.0
    %1172 = vmatpush1.msra.mxu0 %v1145
    %1173 = vmatprep.subr.mxu0 0.0
    %1174 = vmatpush1.msra.mxu0 %v1146
    %1175 = vmatprep.subr.mxu0 0.0
    %1176 = vmatpush1.msra.mxu0 %v1147
    %1177 = vmatprep.subr.mxu0 0.0
    %1178 = vmatpush1.msra.mxu0 %v1148
    %1179 = vmatprep.subr.mxu0 0.0
    %1180 = vmatpush1.msra.mxu0 %v1149
    %1181 = vmatprep.subr.mxu0 0.0
    %1182 = vmatpush1.msra.mxu0 %v1150
    %1183 = vmatprep.subr.mxu0 0.0
    %1184 = vmatpush1.msra.mxu0 0.0
    %1185 = vmatprep.subr.mxu0 0.0
    %1186 = vmatpush1.msra.mxu0 0.0
    %1187 = vmatprep.subr.mxu0 0.0
    %1188 = vmatpush1.msra.mxu0 0.0
    %1189 = vmatprep.subr.mxu0 0.0
    %1190 = vmatpush1.msra.mxu0 0.0
    %1191 = vmatprep.subr.mxu0 0.0
    %1192 = vmatpush1.msra.mxu0 0.0
    %1193 = vmatprep.subr.mxu0 0.0
    %1194 = vmatpush1.msra.mxu0 0.0
    %1195 = vmatprep.subr.mxu0 0.0
    %1196 = vmatpush1.msra.mxu0 0.0
    %1197 = vmatprep.subr.mxu0 0.0
    %1198 = vmatpush1.msra.mxu0 0.0
    %1199 = vmatprep.subr.mxu0 0.0
    %1200 = vmatpush1.msra.mxu0 0.0
    %1201 = vmatprep.subr.mxu0 0.0
    %1202 = vmatpush1.msra.mxu0 0.0
    %1203 = vmatprep.subr.mxu0 0.0
    %1204 = vmatpush1.msra.mxu0 0.0
    %1205 = vmatprep.subr.mxu0 0.0
    %1206 = vmatpush1.msra.mxu0 0.0
    %1207 = vmatprep.subr.mxu0 0.0
    %1208 = vmatpush1.msra.mxu0 0.0
    %1209 = vmatprep.subr.mxu0 0.0
    %1210 = vmatpush1.msra.mxu0 0.0
    %1211 = vmatprep.subr.mxu0 0.0
    %1212 = vmatpush1.msra.mxu0 0.0
    %1213 = vmatprep.subr.mxu0 0.0
    %1214 = vmatpush1.msra.mxu0 0.0
    %1215 = vmatprep.mubr.f32.mxu0 0.0
    %1216 = vmatmul.mubr.f32.gmra.mrb[0].mxu0 %v1130
    %v1217 = vpop.f32.mrb[0].mxu0
    %v1218 = vadd.f32 0.0, %v1217
    %v1219 = vpop.f32.mrb[0].mxu0
    %1220 = vdwg.mxu0
    %vm1221 = vcmask 56320
    %1222 = vst.msk [vmem:[#allocation5] sm:$0xff] %vm1221, %v1218
    // Predicated region
    $region18: #{tpu_custom_call.1} parent=1 // pred_check
      _
    $region19: #{tpu_custom_call.1} parent=1 // pred_check_branch
      %1224 = sbr.rel (0) target = $region21
    $region20: #{tpu_custom_call.1} parent=1 // pred_region
      %s1226 = ssub.s32 128, 128
      %1227 = vsyncadd [#allocation4], %s1226
      %s1229 = sshll.u32 [#allocation5], 4
      %s1230 = int_to_ptr.vmem [resolvable:$true] %s1229
      %1232 = dma.vmem_to_hbm [thread:$0]  %s1230, 128, %s3, [#allocation4]
    $region21: #{tpu_custom_call.1} parent=1 // pred_fallthru
      _
    // Predicated region
    $region22: #{tpu_custom_call.1} parent=1 // pred_check
      _
    $region23: #{tpu_custom_call.1} parent=1 // pred_check_branch
      %1234 = sbr.rel (0) target = $region25
    $region24: #{tpu_custom_call.1} parent=1 // pred_region
      %1235 = dma.done [#allocation4], 128
    $region25: #{tpu_custom_call.1} parent=1 // pred_fallthru
      _
    %1236 = vsyncpa [#allocation3], 1
    %1237 = vsyncpa [#allocation4], 1

</llo_original>
